<compile_context>
chip_gen: v7x
topology: tpu7x:2x2x1
jax: 0.10.0
libtpu: 0.0.40
codegen_flags: <defaults>
</compile_context>

<pallas_src>
import functools

import jax
import jax.numpy as jnp
from jax import lax
from jax.experimental import pallas as pl
from jax.experimental.pallas import tpu as pltpu


def _round_up(x, m):
    return ((x + m - 1) // m) * m


def _stage2_tile(n, d):
    """Square (TM == TN) tile for the N x N logits pass.

    Prefer big tiles (amortize ~0.35us/step grid overhead, fewer column
    re-streams) while keeping double-buffered bf16 operands plus the (TM,TN)
    f32 logits/exp intermediates under ~40 MiB (fits v7x's 64 MiB VMEM with
    headroom); prefer >= 2 row tiles so both v7x TensorCores get work."""
    def fits(t):
        footprint = (4 * t * d * 2      # double-buffered bf16 row + col slabs
                     + 3 * t * t * 4    # logits + exp f32 intermediates
                     + t * 128 * 4      # lane-dense accumulator scratch
                     + 2 * t * 4)       # (TM, 1) output buffers
        return footprint <= (40 << 20)

    cands = (1024, 512, 256, 128, 64, 32, 16, 8)
    for t in cands:                      # first pass: insist on >= 2 row tiles
        if 2 * t <= n and fits(t):
            return t
    for t in cands:                      # second pass: at least fit the batch
        if t <= n and fits(t):
            return t
    return 8


def _stage1_tile(bp, d):
    """Row tile for the normalize pass (bp is already a multiple of 8)."""
    for t in (512, 256, 128, 64, 32, 16, 8):
        if bp % t == 0 and 10 * t * d * 4 <= (24 << 20):
            return t
    return 8


def _vmem_limit(est_bytes):
    # actual resident footprint + headroom, clamped to a range safe on all gens
    # (<= 48 MiB so it also fits v7x's 64 MiB per-TensorCore VMEM).
    return int(min(max(est_bytes + (4 << 20), 16 << 20), 48 << 20))


# ---------------------------------------------------------------------------
# Stage 1: normalize rows, fold sqrt(1/temp), emit bf16 z + f32 positive logits.
# ---------------------------------------------------------------------------
def _normalize_kernel(x_i_ref, x_j_ref, z_ref, pos_ref, *, scale):
    xi = x_i_ref[...].astype(jnp.float32)                # (TB, D)
    xj = x_j_ref[...].astype(jnp.float32)
    # F.normalize(dim=1): x / max(||x||, 1e-12) == x * rsqrt(max(sumsq, 1e-24))
    inv_i = lax.rsqrt(jnp.maximum(jnp.sum(xi * xi, axis=1, keepdims=True), 1e-24))
    inv_j = lax.rsqrt(jnp.maximum(jnp.sum(xj * xj, axis=1, keepdims=True), 1e-24))
    zi = xi * (inv_i * scale)                            # carries sqrt(1/temp)
    zj = xj * (inv_j * scale)
    z_ref[0, :, :] = zi.astype(z_ref.dtype)
    z_ref[1, :, :] = zj.astype(z_ref.dtype)
    # positive logit: z_i[k].z_j[k] / temp (both factors carry sqrt(1/temp)), f32
    pos_ref[...] = jnp.sum(zi * zj, axis=1, keepdims=True)


# ---------------------------------------------------------------------------
# Stage 2: tiled logits -> exp -> lane-dense online row-sum -> log(denom).
# ---------------------------------------------------------------------------
def _denom_kernel(z_row_ref, z_col_ref, out_ref, acc_ref, *, acc_w, pad_cols):
    j = pl.program_id(1)

    @pl.when(j == 0)
    def _():
        acc_ref[...] = jnp.zeros_like(acc_ref)

    # logits tile = (sim / temp)[iTM:(i+1)TM, jTN:(j+1)TN]; bf16 operands, f32 acc
    logits = lax.dot_general(
        z_row_ref[...], z_col_ref[...],
        dimension_numbers=(((1,), (1,)), ((), ())),
        preferred_element_type=jnp.float32,
    )                                                    # (TM, TN) f32
    e = jnp.exp(logits)

    # Lane-dense partial sums: pure VPU adds of 128-wide column groups into a
    # (TM, acc_w) accumulator; the cross-lane reduce is deferred to the last j.
    tn = e.shape[1]
    acc = acc_ref[...]
    for g in range(tn // acc_w):
        acc = acc + e[:, g * acc_w:(g + 1) * acc_w]
    acc_ref[...] = acc

    @pl.when(j == pl.num_programs(1) - 1)
    def _():
        row_sum = jnp.sum(acc_ref[...], axis=1, keepdims=True)   # single XLU reduce
        # Exact diagonal term of exp(sim/temp) for this row tile (no per-element
        # mask anywhere): exp(z_k . z_k) with the same bf16 values the MXU saw.
        zr = z_row_ref[...].astype(jnp.float32)
        corr = jnp.exp(jnp.sum(zr * zr, axis=1, keepdims=True))
        if pad_cols:
            # zero-padded columns each contribute exp(0) == 1 exactly
            corr = corr + jnp.float32(pad_cols)
        out_ref[...] = jnp.log(row_sum - corr)


def contrast_loss(x_i, x_j, temperature=0.5):
    """NT-Xent contrastive loss matching Contrast.forward (returns scalar f32)."""
    assert x_i.shape == x_j.shape and x_i.ndim == 2
    B, D = x_i.shape
    N = 2 * B
    scale = float(1.0 / (float(temperature) ** 0.5))     # sqrt(1/temp), trace-time

    # Pick the stage-2 tile first; pad the batch so 2*Bp is a multiple of it
    # (keeps pipelined, MXU-aligned blocks for arbitrary batch sizes).
    T2 = _stage2_tile(N, D)
    Bp = _round_up(B, max(8, T2 // 2))
    Np = 2 * Bp
    if Bp != B:
        x_i = jnp.pad(x_i, ((0, Bp - B), (0, 0)))
        x_j = jnp.pad(x_j, ((0, Bp - B), (0, 0)))

    # ---- Stage 1 -----------------------------------------------------------
    TB = _stage1_tile(Bp, D)
    est1 = 10 * TB * D * 4
    z2, pos = pl.pallas_call(
        functools.partial(_normalize_kernel, scale=scale),
        out_shape=(jax.ShapeDtypeStruct((2, Bp, D), jnp.bfloat16),
                   jax.ShapeDtypeStruct((Bp, 1), jnp.float32)),
        grid=(Bp // TB,),
        in_specs=[
            pl.BlockSpec((TB, D), lambda i: (i, 0)),               # x_i tile
            pl.BlockSpec((TB, D), lambda i: (i, 0)),               # x_j tile
        ],
        out_specs=(
            pl.BlockSpec((2, TB, D), lambda i: (0, i, 0)),         # z (scaled, bf16)
            pl.BlockSpec((TB, 1), lambda i: (i, 0)),               # positive logits
        ),
        compiler_params=pltpu.CompilerParams(
            dimension_semantics=("parallel",),
            vmem_limit_bytes=_vmem_limit(est1),
        ),
    )(x_i, x_j)

    # (2, Bp, D) -> (2Bp, D): free view; row order matches torch.cat([z_i, z_j]).
    z = z2.reshape(Np, D)

    # ---- Stage 2 -----------------------------------------------------------
    TM = TN = T2
    ACC_W = min(TN, 128)
    est2 = 3 * TM * TN * 4 + 4 * TM * D * 2 * 2 + TM * ACC_W * 4
    logdenom = pl.pallas_call(
        functools.partial(_denom_kernel, acc_w=ACC_W, pad_cols=float(Np - N)),
        out_shape=jax.ShapeDtypeStruct((Np, 1), jnp.float32),
        grid=(Np // TM, Np // TN),
        in_specs=[
            pl.BlockSpec((TM, D), lambda i, j: (i, 0)),            # z row tile
            pl.BlockSpec((TN, D), lambda i, j: (j, 0)),            # z col tile
        ],
        out_specs=pl.BlockSpec((TM, 1), lambda i, j: (i, 0)),      # log(denom)
        scratch_shapes=[pltpu.VMEM((TM, ACC_W), jnp.float32)],
        compiler_params=pltpu.CompilerParams(
            dimension_semantics=("parallel", "arbitrary"),
            vmem_limit_bytes=_vmem_limit(est2),
        ),
    )(z, z)

    # ---- Stage 3: tiny finalize in plain jnp (no extra kernel launch) -------
    ld = logdenom[:, 0]
    sum_ld = jnp.sum(ld[:B]) + jnp.sum(ld[Bp:Bp + B])    # real rows only
    sum_pos = jnp.sum(pos[:B, 0])                        # shared by rows k and k+B
    return (sum_ld - 2.0 * sum_pos) / jnp.float32(N)


def _contrast_loss_ref(x_i, x_j, temperature=0.5):
    """Pure-JAX reference mirroring the PyTorch module (f32 throughout)."""
    x_i = x_i.astype(jnp.float32)
    x_j = x_j.astype(jnp.float32)
    B = x_i.shape[0]
    z_i = x_i / jnp.maximum(jnp.linalg.norm(x_i, axis=1, keepdims=True), 1e-12)
    z_j = x_j / jnp.maximum(jnp.linalg.norm(x_j, axis=1, keepdims=True), 1e-12)
    z = jnp.concatenate([z_i, z_j], axis=0)
    sim = jnp.matmul(z, z.T, precision=lax.Precision.HIGHEST)
    sim_ij = jnp.diagonal(sim, offset=B)
    sim_ji = jnp.diagonal(sim, offset=-B)
    pos = jnp.concatenate([sim_ij, sim_ji], axis=0)
    neg_mask = 1.0 - jnp.eye(2 * B, dtype=jnp.float32)
    nom = jnp.exp(pos / temperature)
    denom = jnp.sum(neg_mask * jnp.exp(sim / temperature), axis=1)
    return jnp.sum(-jnp.log(nom / denom)) / (2 * B)


if __name__ == "__main__":
    key = jax.random.PRNGKey(0)
    k1, k2 = jax.random.split(key)
    B, D = 8, 128            # small batch of projection-head feature vectors
    x_i = jax.random.normal(k1, (B, D), dtype=jnp.float32)
    x_j = jax.random.normal(k2, (B, D), dtype=jnp.float32)

    loss = contrast_loss(x_i, x_j, temperature=0.5)
    loss = jax.block_until_ready(loss)

    ref = _contrast_loss_ref(x_i, x_j, temperature=0.5)
    # bf16 MXU operands in stage 2 => ~1e-3-level agreement vs f32 HIGHEST ref.
    assert jnp.allclose(loss, ref, rtol=1e-2, atol=1e-2), (loss, ref)

    print("KERNEL_OK")
</pallas_src>

<mosaic_0001>
module attributes {stable_mosaic.version = 11 : i64} {
  func.func @_normalize_kernel(%arg0: i32, %arg1: memref<8x128xf32, #tpu.memory_space<vmem>>, %arg2: memref<8x128xf32, #tpu.memory_space<vmem>>, %arg3: memref<2x8x128xbf16, #tpu.memory_space<vmem>>, %arg4: memref<8x1xf32, #tpu.memory_space<vmem>>) attributes {dimension_semantics = [#tpu.dimension_semantics<parallel>], iteration_bounds = array<i64: 1>, scalar_prefetch = 0 : i64, scratch_operands = 0 : i64, tpu.core_type = #tpu.core_type<tc>, window_params = [{transform_indices = @transform_0, window_bounds = array<i64: 8, 128>}, {transform_indices = @transform_1, window_bounds = array<i64: 8, 128>}, {transform_indices = @transform_2, window_bounds = array<i64: 2, 8, 128>}, {transform_indices = @transform_3, window_bounds = array<i64: 8, 1>}]} {
    %c0 = arith.constant 0 : index
    %c0_0 = arith.constant 0 : index
    %0 = vector.load %arg1[%c0, %c0_0] : memref<8x128xf32, #tpu.memory_space<vmem>>, vector<8x128xf32>
    %c0_1 = arith.constant 0 : index
    %c0_2 = arith.constant 0 : index
    %1 = vector.load %arg2[%c0_1, %c0_2] : memref<8x128xf32, #tpu.memory_space<vmem>>, vector<8x128xf32>
    %2 = arith.mulf %0, %0 : vector<8x128xf32>
    %cst = arith.constant dense<0.000000e+00> : vector<8xf32>
    %3 = vector.multi_reduction <add>, %2, %cst [1] : vector<8x128xf32> to vector<8xf32>
    %4 = vector.shape_cast %3 : vector<8xf32> to vector<8x1xf32>
    %cst_3 = arith.constant 1.000000e-24 : f32
    %5 = vector.broadcast %cst_3 : f32 to vector<8x1xf32>
    %6 = arith.maximumf %4, %5 : vector<8x1xf32>
    %7 = math.rsqrt %6 : vector<8x1xf32>
    %8 = arith.mulf %1, %1 : vector<8x128xf32>
    %cst_4 = arith.constant dense<0.000000e+00> : vector<8xf32>
    %9 = vector.multi_reduction <add>, %8, %cst_4 [1] : vector<8x128xf32> to vector<8xf32>
    %10 = vector.shape_cast %9 : vector<8xf32> to vector<8x1xf32>
    %cst_5 = arith.constant 1.000000e-24 : f32
    %11 = vector.broadcast %cst_5 : f32 to vector<8x1xf32>
    %12 = arith.maximumf %10, %11 : vector<8x1xf32>
    %13 = math.rsqrt %12 : vector<8x1xf32>
    %cst_6 = arith.constant 1.41421354 : f32
    %14 = vector.broadcast %cst_6 : f32 to vector<8x1xf32>
    %15 = arith.mulf %7, %14 : vector<8x1xf32>
    %16 = vector.broadcast %15 : vector<8x1xf32> to vector<8x128xf32>
    %17 = arith.mulf %0, %16 : vector<8x128xf32>
    %cst_7 = arith.constant 1.41421354 : f32
    %18 = vector.broadcast %cst_7 : f32 to vector<8x1xf32>
    %19 = arith.mulf %13, %18 : vector<8x1xf32>
    %20 = vector.broadcast %19 : vector<8x1xf32> to vector<8x128xf32>
    %21 = arith.mulf %1, %20 : vector<8x128xf32>
    %22 = arith.truncf %17 : vector<8x128xf32> to vector<8x128xbf16>
    %c0_8 = arith.constant 0 : index
    %c0_9 = arith.constant 0 : index
    %c0_10 = arith.constant 0 : index
    %23 = vector.load %arg3[%c0_8, %c0_9, %c0_10] : memref<2x8x128xbf16, #tpu.memory_space<vmem>>, vector<1x8x128xbf16>
    %24 = vector.shape_cast %23 : vector<1x8x128xbf16> to vector<8x128xbf16>
    %25 = vector.shape_cast %22 : vector<8x128xbf16> to vector<1x8x128xbf16>
    tpu.vector_store %arg3[%c0_8, %c0_9, %c0_10], %25 {strides = array<i32>} : memref<2x8x128xbf16, #tpu.memory_space<vmem>>, vector<1x8x128xbf16>,
    %26 = arith.truncf %21 : vector<8x128xf32> to vector<8x128xbf16>
    %c1 = arith.constant 1 : index
    %c0_11 = arith.constant 0 : index
    %c0_12 = arith.constant 0 : index
    %27 = vector.load %arg3[%c1, %c0_11, %c0_12] : memref<2x8x128xbf16, #tpu.memory_space<vmem>>, vector<1x8x128xbf16>
    %28 = vector.shape_cast %27 : vector<1x8x128xbf16> to vector<8x128xbf16>
    %29 = vector.shape_cast %26 : vector<8x128xbf16> to vector<1x8x128xbf16>
    tpu.vector_store %arg3[%c1, %c0_11, %c0_12], %29 {strides = array<i32>} : memref<2x8x128xbf16, #tpu.memory_space<vmem>>, vector<1x8x128xbf16>,
    %30 = arith.mulf %17, %21 : vector<8x128xf32>
    %cst_13 = arith.constant dense<0.000000e+00> : vector<8xf32>
    %31 = vector.multi_reduction <add>, %30, %cst_13 [1] : vector<8x128xf32> to vector<8xf32>
    %32 = vector.shape_cast %31 : vector<8xf32> to vector<8x1xf32>
    %c0_14 = arith.constant 0 : index
    %c0_15 = arith.constant 0 : index
    %33 = vector.load %arg4[%c0_14, %c0_15] : memref<8x1xf32, #tpu.memory_space<vmem>>, vector<8x1xf32>
    tpu.vector_store %arg4[%c0_14, %c0_15], %32 {strides = array<i32>} : memref<8x1xf32, #tpu.memory_space<vmem>>, vector<8x1xf32>,
    return
  }
  func.func @transform_0(%arg0: i32) -> (i32, i32) {
    %c0_i32 = arith.constant 0 : i32
    %c0_i32_0 = arith.constant 0 : i32
    return %arg0, %c0_i32 : i32, i32
  }
  func.func @transform_1(%arg0: i32) -> (i32, i32) {
    %c0_i32 = arith.constant 0 : i32
    %c0_i32_0 = arith.constant 0 : i32
    return %arg0, %c0_i32 : i32, i32
  }
  func.func @transform_2(%arg0: i32) -> (i32, i32, i32) {
    %c0_i32 = arith.constant 0 : i32
    %c0_i32_0 = arith.constant 0 : i32
    %c0_i32_1 = arith.constant 0 : i32
    return %c0_i32, %arg0, %c0_i32_0 : i32, i32, i32
  }
  func.func @transform_3(%arg0: i32) -> (i32, i32) {
    %c0_i32 = arith.constant 0 : i32
    %c0_i32_0 = arith.constant 0 : i32
    return %arg0, %c0_i32 : i32, i32
  }
}

</mosaic_0001>

<llo_original>
// kernel: tpu_custom_call.1
$region0: #{tpu_custom_call.1}
  #allocation0 [shape = 'u32[]', space=smem, size = 0x4, offset = 0x4, fixed_abs, tag = 'smem constant byte address 0x4 - core index']
  #allocation1 [shape = 'u32[144,128]{1,0:T(1,128)}', space=vmem, size = 0x12000, scoped, tag = 'internal scratch']
  %s0 = inlined_call_operand.hbm [shape: f32[8,128], index: 0, kind: input, shape index: {}]
  %s1 = inlined_call_operand.hbm [shape: f32[8,128], index: 1, kind: input, shape index: {}]
  %s2 = inlined_call_operand.hbm [shape: bf16[2,8,128], index: 2, kind: output, shape index: {0}]
  %s3 = inlined_call_operand.vmem [shape: f32[8,1], index: 3, kind: output, shape index: {1}]
  %4 = xla_tuple %s2, %s3
  %s5 = sld [smem:[#allocation0]]
  $region34: #{tpu_custom_call.1} parent=0
    _
  %s7 = ssub.s32 1, %s5
  %s8 = scalar_select 0, %s7, %s5
  $region1: #{tpu_custom_call.1} parent=0
    #allocation2 [shape = 'u8[4096]{0}', space=vmem, size = 0x1000, scoped, tag = 'input window, operand 0, single buffered']
    #allocation3 [shape = 's32[1]{0}', space=sflag, size = 0x4, scoped, tag = 'scoped memory for tpu_custom_call.1']
    #allocation4 [shape = 's32[1]{0}', space=sflag, size = 0x4, scoped, tag = 'scoped memory for tpu_custom_call.1']
    #allocation5 [shape = 'u8[4096]{0}', space=vmem, size = 0x1000, scoped, tag = 'input window, operand 1, single buffered']
    #allocation6 [shape = 's32[1]{0}', space=sflag, size = 0x4, scoped, tag = 'scoped memory for tpu_custom_call.1']
    #allocation7 [shape = 'u8[4096]{0}', space=vmem, size = 0x1000, scoped, tag = 'output window, operand 0, single buffered']
    %9 = vsyncpa [#allocation3], 0
    %10 = vsyncpa [#allocation6], 0
    %11 = vsyncpa [#allocation4], 0
    // Predicated region
    $region2: #{tpu_custom_call.1} parent=1 // pred_check
      _
    $region3: #{tpu_custom_call.1} parent=1 // pred_check_branch
      %13 = sbr.rel (0) target = $region5
    $region4: #{tpu_custom_call.1} parent=1 // pred_region
      %s15 = ssub.s32 128, 128
      %16 = vsyncadd [#allocation3], %s15
      %s18 = sshll.u32 [#allocation2], 4
      %s19 = int_to_ptr.vmem [resolvable:$true] %s18
      %21 = dma.hbm_to_vmem [thread:$0]  %s0, 128, %s19, [#allocation3]
    $region5: #{tpu_custom_call.1} parent=1 // pred_fallthru
      _
    // Predicated region
    $region6: #{tpu_custom_call.1} parent=1 // pred_check
      _
    $region7: #{tpu_custom_call.1} parent=1 // pred_check_branch
      %23 = sbr.rel (0) target = $region9
    $region8: #{tpu_custom_call.1} parent=1 // pred_region
      %s25 = ssub.s32 128, 128
      %26 = vsyncadd [#allocation6], %s25
      %s28 = sshll.u32 [#allocation5], 4
      %s29 = int_to_ptr.vmem [resolvable:$true] %s28
      %31 = dma.hbm_to_vmem [thread:$0]  %s1, 128, %s29, [#allocation6]
    $region9: #{tpu_custom_call.1} parent=1 // pred_fallthru
      _
    // Predicated region
    $region10: #{tpu_custom_call.1} parent=1 // pred_check
      _
    $region11: #{tpu_custom_call.1} parent=1 // pred_check_branch
      %33 = sbr.rel (0) target = $region13
    $region12: #{tpu_custom_call.1} parent=1 // pred_region
      %34 = dma.done [#allocation3], 128
    $region13: #{tpu_custom_call.1} parent=1 // pred_fallthru
      _
    // Predicated region
    $region14: #{tpu_custom_call.1} parent=1 // pred_check
      _
    $region15: #{tpu_custom_call.1} parent=1 // pred_check_branch
      %36 = sbr.rel (0) target = $region17
    $region16: #{tpu_custom_call.1} parent=1 // pred_region
      %37 = dma.done [#allocation6], 128
    $region17: #{tpu_custom_call.1} parent=1 // pred_fallthru
      _
    %v38 = vld [vmem:[#allocation2] sm:$0xff]
    %v39 = vld [vmem:[#allocation5] sm:$0xff]
    %v40 = vmul.f32 %v38, %v38
    %41 = vadd.xlane.f32.xlu0 %v40
    %v42 = vpop.xlane.xlu0 %41
    %v43 = vmax.f32 %v42, 1e-24
    %v44 = vrsqrt.pop %v43
    %v45 = vmul.f32 %v39, %v39
    %46 = vadd.xlane.f32.xlu0 %v45
    %v47 = vpop.xlane.xlu0 %46
    %v48 = vmax.f32 %v47, 1e-24
    %v49 = vrsqrt.pop %v48
    %v50 = vmul.f32 %v44, 1.4142135
    %v51 = vmul.f32 %v38, %v50
    %v52 = vmul.f32 %v49, 1.4142135
    %v53 = vmul.f32 %v39, %v52
    %v54 = vpack.c.bf16 %v51, %v51
    %55 = vst [vmem:[#allocation7] sm:$0xf] %v54
    %v56 = vpack.c.bf16 %v53, %v53
    %s57 = scalar_lea.vmem [#allocation7], 4
    %58 = vst [vmem:[%s57] sm:$0xf] %v56
    %v59 = vmul.f32 %v51, %v53
    %60 = vadd.xlane.f32.xlu0 %v59
    %v61 = vpop.xlane.xlu0 %60
    %vm62 = vcmask 7168
    %63 = vst.msk [vmem:[%s3] sm:$0xff] %vm62, %v61
    // Predicated region
    $region18: #{tpu_custom_call.1} parent=1 // pred_check
      _
    $region19: #{tpu_custom_call.1} parent=1 // pred_check_branch
      %65 = sbr.rel (0) target = $region21
    $region20: #{tpu_custom_call.1} parent=1 // pred_region
      %s67 = ssub.s32 128, 128
      %68 = vsyncadd [#allocation4], %s67
      %s69 = sshll.u32 [#allocation7], 4
      %s70 = int_to_ptr.vmem [resolvable:$true] %s69
      %75 = dma.vmem_to_hbm [thread:$0]  %s70, 128, %s2, [#allocation4], 64, 64, 4
    $region21: #{tpu_custom_call.1} parent=1 // pred_fallthru
      _
    // Predicated region
    $region22: #{tpu_custom_call.1} parent=1 // pred_check
      _
    $region23: #{tpu_custom_call.1} parent=1 // pred_check_branch
      %77 = sbr.rel (0) target = $region25
    $region24: #{tpu_custom_call.1} parent=1 // pred_region
      _
    $region25: #{tpu_custom_call.1} parent=1 // pred_fallthru
      _
    // Predicated region
    $region26: #{tpu_custom_call.1} parent=1 // pred_check
      _
    $region27: #{tpu_custom_call.1} parent=1 // pred_check_branch
      %79 = sbr.rel (0) target = $region29
    $region28: #{tpu_custom_call.1} parent=1 // pred_region
      %80 = dma.done [#allocation4], 128
    $region29: #{tpu_custom_call.1} parent=1 // pred_fallthru
      _
    // Predicated region
    $region30: #{tpu_custom_call.1} parent=1 // pred_check
      _
    $region31: #{tpu_custom_call.1} parent=1 // pred_check_branch
      %82 = sbr.rel (0) target = $region33
    $region32: #{tpu_custom_call.1} parent=1 // pred_region
      _
    $region33: #{tpu_custom_call.1} parent=1 // pred_fallthru
      _
    %83 = vsyncpa [#allocation3], 1
    %84 = vsyncpa [#allocation6], 1
    %85 = vsyncpa [#allocation4], 1

</llo_original>
